<compile_context>
chip_gen: v7x
topology: tpu7x:2x2x1
jax: 0.10.0
libtpu: 0.0.40
codegen_flags: <defaults>
</compile_context>

<pallas_src>
import functools

import jax
import jax.numpy as jnp
from jax.experimental import pallas as pl
from jax.experimental.pallas import tpu as pltpu


LANE = 128
COMPUTE_DTYPE = jnp.bfloat16           # MXU inputs; accumulation stays f32
VMEM_LIMIT_BYTES = 48 * 1024 * 1024    # headroom below v7x's 64 MiB VMEM


def _round_up(x, m):
    return ((x + m - 1) // m) * m


def _pad2(x, rows, cols):
    return jnp.pad(x, ((0, rows - x.shape[0]), (0, cols - x.shape[1])))


def _pick_tiles(n_pad):
    """Biggest tile that divides the padded node dim (n_pad is a multiple of 128)."""
    for t in (512, 256, 128):
        if n_pad % t == 0:
            return t, t
    return 128, 128


# ----------------------------------------------------------------------------
# Pallas kernels
# ----------------------------------------------------------------------------
def _sage_layer_kernel(a_ref, xk_ref, xr_ref, wn_ref, wr_ref,
                       scale_ref, shift_ref, o_ref, acc_ref):
    """relu( scale * ( (A_mean@X)@W_nbr + X@W_root ) + shift ).

    Grid = (row tiles i [parallel], reduction tiles k [arbitrary, last]).
    acc_ref (f32 VMEM) accumulates the row-tile of A_mean @ X over k.
    """
    k = pl.program_id(1)

    @pl.when(k == 0)
    def _():
        acc_ref[...] = jnp.zeros_like(acc_ref)

    acc_ref[...] += jnp.dot(a_ref[...], xk_ref[...],
                            preferred_element_type=jnp.float32)

    @pl.when(k == pl.num_programs(1) - 1)
    def _():
        agg = acc_ref[...].astype(wn_ref.dtype)
        h = jnp.dot(agg, wn_ref[...], preferred_element_type=jnp.float32)
        h = h + jnp.dot(xr_ref[...], wr_ref[...],
                        preferred_element_type=jnp.float32)
        y = h * scale_ref[...] + shift_ref[...]          # folded BN(eval) + bias
        o_ref[...] = jnp.maximum(y, 0.0).astype(o_ref.dtype)


def _classifier_kernel(num_layers, num_classes, apply_log_softmax, *refs):
    """Per-node classifier on the (virtual) concat of layer outputs.

    logits = sum_l h_l @ W_l + b ; optional masked log_softmax over the
    first `num_classes` (valid) lanes.  refs = h_0..h_{L-1}, w_0..w_{L-1}, b, out.
    """
    h_refs = refs[0:num_layers]
    w_refs = refs[num_layers:2 * num_layers]
    b_ref = refs[2 * num_layers]
    o_ref = refs[2 * num_layers + 1]

    acc = jnp.dot(h_refs[0][...], w_refs[0][...],
                  preferred_element_type=jnp.float32)
    for hl, wl in zip(h_refs[1:], w_refs[1:]):
        acc = acc + jnp.dot(hl[...], wl[...],
                            preferred_element_type=jnp.float32)
    logits = acc + b_ref[...]

    if apply_log_softmax:
        # Mask padded class lanes so they do not contribute to the softmax.
        col = jax.lax.broadcasted_iota(jnp.int32, logits.shape, 1)
        logits = jnp.where(col < num_classes, logits, jnp.float32(-1e30))
        m = jnp.max(logits, axis=-1, keepdims=True)
        z = logits - m
        lse = jnp.log(jnp.sum(jnp.exp(z), axis=-1, keepdims=True))
        out = z - lse
    else:
        out = logits
    o_ref[...] = out.astype(o_ref.dtype)


# ----------------------------------------------------------------------------
# pallas_call wrappers
# ----------------------------------------------------------------------------
def sage_layer(a_pad, x_pad, w_nbr, w_root, scale, shift, *, tm, tk):
    n_pad = a_pad.shape[0]
    c_in_pad = x_pad.shape[1]
    c_out_pad = w_nbr.shape[1]
    grid = (n_pad // tm, n_pad // tk)

    flops = int(2 * n_pad * n_pad * c_in_pad + 4 * n_pad * c_in_pad * c_out_pad)
    bytes_accessed = int(
        a_pad.size * a_pad.dtype.itemsize
        + 2 * x_pad.size * x_pad.dtype.itemsize
        + (w_nbr.size + w_root.size) * w_nbr.dtype.itemsize
        + (scale.size + shift.size) * 4
        + n_pad * c_out_pad * 2)

    return pl.pallas_call(
        _sage_layer_kernel,
        out_shape=jax.ShapeDtypeStruct((n_pad, c_out_pad), COMPUTE_DTYPE),
        grid_spec=pltpu.PrefetchScalarGridSpec(
            num_scalar_prefetch=0,
            grid=grid,
            in_specs=[
                pl.BlockSpec((tm, tk), lambda i, k: (i, k)),          # A tile
                pl.BlockSpec((tk, c_in_pad), lambda i, k: (k, 0)),    # X (agg)
                pl.BlockSpec((tm, c_in_pad), lambda i, k: (i, 0)),    # X (root)
                pl.BlockSpec((c_in_pad, c_out_pad), lambda i, k: (0, 0)),
                pl.BlockSpec((c_in_pad, c_out_pad), lambda i, k: (0, 0)),
                pl.BlockSpec((1, c_out_pad), lambda i, k: (0, 0)),
                pl.BlockSpec((1, c_out_pad), lambda i, k: (0, 0)),
            ],
            out_specs=pl.BlockSpec((tm, c_out_pad), lambda i, k: (i, 0)),
            scratch_shapes=[pltpu.VMEM((tm, c_in_pad), jnp.float32)]),
        compiler_params=pltpu.CompilerParams(
            dimension_semantics=("parallel", "arbitrary"),
            vmem_limit_bytes=VMEM_LIMIT_BYTES),
        cost_estimate=pl.CostEstimate(flops=flops, transcendentals=0,
                                      bytes_accessed=bytes_accessed),
    )(a_pad, x_pad, x_pad, w_nbr, w_root, scale, shift)


def classifier_head(h_list, w_chunks, b, num_classes, apply_log_softmax, *, tm):
    num_layers = len(h_list)
    n_pad, hidden_pad = h_list[0].shape
    c_pad = w_chunks[0].shape[1]
    grid = (n_pad // tm,)

    flops = int(2 * n_pad * hidden_pad * c_pad * num_layers)
    transcend = int(n_pad * c_pad) if apply_log_softmax else 0
    bytes_accessed = int(
        sum(h.size * h.dtype.itemsize for h in h_list)
        + sum(w.size * w.dtype.itemsize for w in w_chunks)
        + b.size * 4 + n_pad * c_pad * 4)

    in_specs = (
        [pl.BlockSpec((tm, hidden_pad), lambda t: (t, 0)) for _ in h_list]
        + [pl.BlockSpec((hidden_pad, c_pad), lambda t: (0, 0)) for _ in w_chunks]
        + [pl.BlockSpec((1, c_pad), lambda t: (0, 0))])

    kernel = functools.partial(_classifier_kernel, num_layers, num_classes,
                               apply_log_softmax)
    return pl.pallas_call(
        kernel,
        out_shape=jax.ShapeDtypeStruct((n_pad, c_pad), jnp.float32),
        grid_spec=pltpu.PrefetchScalarGridSpec(
            num_scalar_prefetch=0,
            grid=grid,
            in_specs=in_specs,
            out_specs=pl.BlockSpec((tm, c_pad), lambda t: (t, 0))),
        compiler_params=pltpu.CompilerParams(
            dimension_semantics=("parallel",),
            vmem_limit_bytes=VMEM_LIMIT_BYTES),
        cost_estimate=pl.CostEstimate(flops=flops, transcendentals=transcend,
                                      bytes_accessed=bytes_accessed),
    )(*h_list, *w_chunks, b)


# ----------------------------------------------------------------------------
# Plain-JAX glue: mean-aggregation adjacency, padding, forward driver
# ----------------------------------------------------------------------------
def build_mean_adjacency(edge_index, edge_weight, num_nodes):
    """A_mean[i, j] = edge_weight(j->i) / in_degree(i)  (scatter-mean of messages)."""
    src, dst = edge_index[0], edge_index[1]
    w = (jnp.ones(src.shape, jnp.float32) if edge_weight is None
         else edge_weight.astype(jnp.float32))
    a = jnp.zeros((num_nodes, num_nodes), jnp.float32).at[dst, src].add(w)
    deg = jnp.zeros((num_nodes,), jnp.float32).at[dst].add(1.0)
    inv = jnp.where(deg > 0, 1.0 / deg, 0.0)
    return a * inv[:, None]


def sage_forward(params, x, edge_index, edge_weight=None, return_softmax=True,
                 use_bn=True, eps=1e-5):
    n, c_in = x.shape
    num_layers = len(params["layers"])
    hidden = params["layers"][0]["w_nbr"].shape[1]
    out_channels = params["clf_w"].shape[1]

    n_pad = _round_up(n, LANE)
    tm, tk = _pick_tiles(n_pad)

    a = build_mean_adjacency(edge_index, edge_weight, n)
    a_pad = _pad2(a, n_pad, n_pad).astype(COMPUTE_DTYPE)

    c_in_pad = _round_up(c_in, LANE)
    h = _pad2(x.astype(jnp.float32), n_pad, c_in_pad).astype(COMPUTE_DTYPE)

    h_list = []
    for layer in params["layers"]:
        c_i, c_o = layer["w_nbr"].shape
        c_i_pad = _round_up(c_i, LANE)
        c_o_pad = _round_up(c_o, LANE)
        w_nbr = _pad2(layer["w_nbr"], c_i_pad, c_o_pad).astype(COMPUTE_DTYPE)
        w_root = _pad2(layer["w_root"], c_i_pad, c_o_pad).astype(COMPUTE_DTYPE)
        if use_bn:   # fold BatchNorm(eval) + conv bias into scale/shift (f32)
            scale = layer["gamma"] * jax.lax.rsqrt(layer["var"] + eps)
            shift = layer["beta"] + (layer["b"] - layer["mean"]) * scale
        else:
            scale = jnp.ones_like(layer["b"])
            shift = layer["b"]
        scale = _pad2(scale.reshape(1, -1).astype(jnp.float32), 1, c_o_pad)
        shift = _pad2(shift.reshape(1, -1).astype(jnp.float32), 1, c_o_pad)
        h = sage_layer(a_pad, h, w_nbr, w_root, scale, shift, tm=tm, tk=tk)
        h_list.append(h)   # dropout(training=False) is identity

    # Per-node classifier on the virtual concat: split clf_w row-wise per layer.
    hidden_pad = _round_up(hidden, LANE)
    c_out_pad = _round_up(out_channels, LANE)
    w_chunks = []
    for l in range(num_layers):
        w_l = params["clf_w"][l * hidden:(l + 1) * hidden, :]
        w_chunks.append(_pad2(w_l, hidden_pad, c_out_pad).astype(COMPUTE_DTYPE))
    b = _pad2(params["clf_b"].reshape(1, -1).astype(jnp.float32), 1, c_out_pad)

    out = classifier_head(h_list, w_chunks, b, out_channels,
                          bool(return_softmax), tm=tm)
    return out[:n, :out_channels]


def sage_forward_reference(params, x, edge_index, edge_weight=None,
                           return_softmax=True, use_bn=True, eps=1e-5):
    """Pure f32 JAX reference matching the PyTorch module semantics."""
    n = x.shape[0]
    a = build_mean_adjacency(edge_index, edge_weight, n)
    h = x.astype(jnp.float32)
    hs = []
    for layer in params["layers"]:
        out = a @ h @ layer["w_nbr"] + h @ layer["w_root"] + layer["b"]
        if use_bn:
            out = ((out - layer["mean"]) * jax.lax.rsqrt(layer["var"] + eps)
                   * layer["gamma"] + layer["beta"])
        h = jnp.maximum(out, 0.0)
        hs.append(h)
    cat = jnp.concatenate(hs, axis=-1)
    logits = cat @ params["clf_w"] + params["clf_b"].reshape(1, -1)
    if return_softmax:
        logits = jax.nn.log_softmax(logits, axis=-1)
    return logits


# ----------------------------------------------------------------------------
# Deterministic parameter construction (matches module __init__ shapes)
# ----------------------------------------------------------------------------
def init_params(key, in_channels, hidden_channels, out_channels, num_layers):
    keys = jax.random.split(key, 7 * num_layers + 2)
    layers = []
    c_in = in_channels
    ki = 0
    for _ in range(num_layers):
        layers.append(dict(
            w_nbr=0.25 * jax.random.normal(keys[ki], (c_in, hidden_channels), jnp.float32),
            w_root=0.25 * jax.random.normal(keys[ki + 1], (c_in, hidden_channels), jnp.float32),
            b=0.05 * jax.random.normal(keys[ki + 2], (hidden_channels,), jnp.float32),
            gamma=1.0 + 0.1 * jax.random.normal(keys[ki + 3], (hidden_channels,), jnp.float32),
            beta=0.05 * jax.random.normal(keys[ki + 4], (hidden_channels,), jnp.float32),
            mean=0.1 * jax.random.normal(keys[ki + 5], (hidden_channels,), jnp.float32),
            var=1.0 + 0.2 * jnp.abs(jax.random.normal(keys[ki + 6], (hidden_channels,), jnp.float32)),
        ))
        c_in = hidden_channels
        ki += 7
    clf_w = 0.25 * jax.random.normal(keys[ki], (num_layers * hidden_channels, out_channels), jnp.float32)
    clf_b = 0.05 * jax.random.normal(keys[ki + 1], (out_channels,), jnp.float32)
    return dict(layers=layers, clf_w=clf_w, clf_b=clf_b)


# ----------------------------------------------------------------------------
if __name__ == "__main__":
    key = jax.random.PRNGKey(0)
    k_x, k_p = jax.random.split(key)

    num_nodes = 16
    in_channels = 8
    hidden_channels = 32
    out_channels = 4
    num_layers = 2

    x = jax.random.normal(k_x, (num_nodes, in_channels), jnp.float32)

    # Symmetric ring over 16 nodes plus a few chords (varying in-degrees).
    srcs, dsts = [], []
    for i in range(num_nodes):
        j = (i + 1) % num_nodes
        srcs += [i, j]
        dsts += [j, i]
    for a_, b_ in [(0, 7), (3, 12), (5, 9)]:
        srcs += [a_, b_]
        dsts += [b_, a_]
    edge_index = jnp.array([srcs, dsts], dtype=jnp.int32)

    params = init_params(k_p, in_channels, hidden_channels, out_channels, num_layers)

    out = sage_forward(params, x, edge_index, return_softmax=True)
    out = jax.block_until_ready(out)
    assert out.shape == (num_nodes, out_channels)
    # log_softmax normalization sanity check (computed in f32 in-kernel)
    assert jnp.allclose(jnp.sum(jnp.exp(out), axis=-1), 1.0, atol=1e-3)

    ref = sage_forward_reference(params, x, edge_index, return_softmax=True)
    err = float(jnp.max(jnp.abs(out - ref)))
    assert err < 0.25, f"log-softmax mismatch vs f32 reference: {err}"

    logits = sage_forward(params, x, edge_index, return_softmax=False)
    logits = jax.block_until_ready(logits)
    ref_logits = sage_forward_reference(params, x, edge_index, return_softmax=False)
    err_l = float(jnp.max(jnp.abs(logits - ref_logits)))
    assert err_l < 0.25, f"logits mismatch vs f32 reference: {err_l}"

    print("KERNEL_OK")
</pallas_src>

<mosaic_0001>
module attributes {stable_mosaic.version = 11 : i64} {
  func.func @_sage_layer_kernel(%arg0: i32, %arg1: i32, %arg2: memref<128x128xbf16, #tpu.memory_space<vmem>>, %arg3: memref<128x128xbf16, #tpu.memory_space<vmem>>, %arg4: memref<128x128xbf16, #tpu.memory_space<vmem>>, %arg5: memref<128x128xbf16, #tpu.memory_space<vmem>>, %arg6: memref<128x128xbf16, #tpu.memory_space<vmem>>, %arg7: memref<1x128xf32, #tpu.memory_space<vmem>>, %arg8: memref<1x128xf32, #tpu.memory_space<vmem>>, %arg9: memref<128x128xbf16, #tpu.memory_space<vmem>>, %arg10: memref<128x128xf32, #tpu.memory_space<vmem>>) attributes {dimension_semantics = [#tpu.dimension_semantics<parallel>, #tpu.dimension_semantics<arbitrary>], iteration_bounds = array<i64: 1, 1>, scalar_prefetch = 0 : i64, scratch_operands = 1 : i64, tpu.core_type = #tpu.core_type<tc>, window_params = [{transform_indices = @transform_0, window_bounds = array<i64: 128, 128>}, {transform_indices = @transform_1, window_bounds = array<i64: 128, 128>}, {transform_indices = @transform_2, window_bounds = array<i64: 128, 128>}, {pipeline_mode = #tpu.pipeline_mode<synchronous>, transform_indices = @transform_3, window_bounds = array<i64: 128, 128>}, {pipeline_mode = #tpu.pipeline_mode<synchronous>, transform_indices = @transform_4, window_bounds = array<i64: 128, 128>}, {pipeline_mode = #tpu.pipeline_mode<synchronous>, transform_indices = @transform_5, window_bounds = array<i64: 1, 128>}, {pipeline_mode = #tpu.pipeline_mode<synchronous>, transform_indices = @transform_6, window_bounds = array<i64: 1, 128>}, {transform_indices = @transform_7, window_bounds = array<i64: 128, 128>}]} {
    %c0_i32 = arith.constant 0 : i32
    %0 = arith.cmpi eq, %arg1, %c0_i32 : i32
    %1 = arith.extui %0 : i1 to i32
    %c0_i32_0 = arith.constant 0 : i32
    %2 = arith.cmpi ne, %1, %c0_i32_0 : i32
    scf.if %2 {
      %cst_10 = arith.constant 0.000000e+00 : f32
      %12 = vector.broadcast %cst_10 : f32 to vector<128x128xf32>
      %c0_11 = arith.constant 0 : index
      %c0_12 = arith.constant 0 : index
      %13 = vector.load %arg10[%c0_11, %c0_12] : memref<128x128xf32, #tpu.memory_space<vmem>>, vector<128x128xf32>
      tpu.vector_store %arg10[%c0_11, %c0_12], %12 {strides = array<i32>} : memref<128x128xf32, #tpu.memory_space<vmem>>, vector<128x128xf32>,
    } else {
    }
    %c0 = arith.constant 0 : index
    %c0_1 = arith.constant 0 : index
    %3 = vector.load %arg10[%c0, %c0_1] : memref<128x128xf32, #tpu.memory_space<vmem>>, vector<128x128xf32>
    %c0_2 = arith.constant 0 : index
    %c0_3 = arith.constant 0 : index
    %4 = vector.load %arg2[%c0_2, %c0_3] : memref<128x128xbf16, #tpu.memory_space<vmem>>, vector<128x128xbf16>
    %c0_4 = arith.constant 0 : index
    %c0_5 = arith.constant 0 : index
    %5 = vector.load %arg3[%c0_4, %c0_5] : memref<128x128xbf16, #tpu.memory_space<vmem>>, vector<128x128xbf16>
    %cst = arith.constant dense<0.000000e+00> : vector<128x128xf32>
    %6 = tpu.matmul %4, %5, %cst {dimension_numbers = #tpu.dot_dimension_numbers<[1], [0], [0], [1], [0, 0, 1, 1], [], []>} : vector<128x128xbf16>, vector<128x128xbf16>, vector<128x128xf32> -> vector<128x128xf32>
    %7 = arith.addf %3, %6 : vector<128x128xf32>
    %c0_6 = arith.constant 0 : index
    %c0_7 = arith.constant 0 : index
    %8 = vector.load %arg10[%c0_6, %c0_7] : memref<128x128xf32, #tpu.memory_space<vmem>>, vector<128x128xf32>
    tpu.vector_store %arg10[%c0_6, %c0_7], %7 {strides = array<i32>} : memref<128x128xf32, #tpu.memory_space<vmem>>, vector<128x128xf32>,
    %c0_i32_8 = arith.constant 0 : i32
    %9 = arith.cmpi eq, %arg1, %c0_i32_8 : i32
    %10 = arith.extui %9 : i1 to i32
    %c0_i32_9 = arith.constant 0 : i32
    %11 = arith.cmpi ne, %10, %c0_i32_9 : i32
    scf.if %11 {
      %c0_10 = arith.constant 0 : index
      %c0_11 = arith.constant 0 : index
      %12 = vector.load %arg10[%c0_10, %c0_11] : memref<128x128xf32, #tpu.memory_space<vmem>>, vector<128x128xf32>
      %13 = arith.truncf %12 : vector<128x128xf32> to vector<128x128xbf16>
      %c0_12 = arith.constant 0 : index
      %c0_13 = arith.constant 0 : index
      %14 = vector.load %arg5[%c0_12, %c0_13] : memref<128x128xbf16, #tpu.memory_space<vmem>>, vector<128x128xbf16>
      %cst_14 = arith.constant dense<0.000000e+00> : vector<128x128xf32>
      %15 = tpu.matmul %13, %14, %cst_14 {dimension_numbers = #tpu.dot_dimension_numbers<[1], [0], [0], [1], [0, 0, 1, 1], [], []>} : vector<128x128xbf16>, vector<128x128xbf16>, vector<128x128xf32> -> vector<128x128xf32>
      %c0_15 = arith.constant 0 : index
      %c0_16 = arith.constant 0 : index
      %16 = vector.load %arg4[%c0_15, %c0_16] : memref<128x128xbf16, #tpu.memory_space<vmem>>, vector<128x128xbf16>
      %c0_17 = arith.constant 0 : index
      %c0_18 = arith.constant 0 : index
      %17 = vector.load %arg6[%c0_17, %c0_18] : memref<128x128xbf16, #tpu.memory_space<vmem>>, vector<128x128xbf16>
      %cst_19 = arith.constant dense<0.000000e+00> : vector<128x128xf32>
      %18 = tpu.matmul %16, %17, %cst_19 {dimension_numbers = #tpu.dot_dimension_numbers<[1], [0], [0], [1], [0, 0, 1, 1], [], []>} : vector<128x128xbf16>, vector<128x128xbf16>, vector<128x128xf32> -> vector<128x128xf32>
      %19 = arith.addf %15, %18 : vector<128x128xf32>
      %c0_20 = arith.constant 0 : index
      %c0_21 = arith.constant 0 : index
      %20 = vector.load %arg7[%c0_20, %c0_21] : memref<1x128xf32, #tpu.memory_space<vmem>>, vector<1x128xf32>
      %21 = vector.broadcast %20 : vector<1x128xf32> to vector<128x128xf32>
      %22 = arith.mulf %19, %21 : vector<128x128xf32>
      %c0_22 = arith.constant 0 : index
      %c0_23 = arith.constant 0 : index
      %23 = vector.load %arg8[%c0_22, %c0_23] : memref<1x128xf32, #tpu.memory_space<vmem>>, vector<1x128xf32>
      %24 = vector.broadcast %23 : vector<1x128xf32> to vector<128x128xf32>
      %25 = arith.addf %22, %24 : vector<128x128xf32>
      %cst_24 = arith.constant 0.000000e+00 : f32
      %26 = vector.broadcast %cst_24 : f32 to vector<128x128xf32>
      %27 = arith.maximumf %25, %26 : vector<128x128xf32>
      %28 = arith.truncf %27 : vector<128x128xf32> to vector<128x128xbf16>
      %c0_25 = arith.constant 0 : index
      %c0_26 = arith.constant 0 : index
      %29 = vector.load %arg9[%c0_25, %c0_26] : memref<128x128xbf16, #tpu.memory_space<vmem>>, vector<128x128xbf16>
      tpu.vector_store %arg9[%c0_25, %c0_26], %28 {strides = array<i32>} : memref<128x128xbf16, #tpu.memory_space<vmem>>, vector<128x128xbf16>,
    } else {
    }
    return
  }
  func.func @transform_0(%arg0: i32, %arg1: i32) -> (i32, i32) {
    %c0_i32 = arith.constant 0 : i32
    return %arg0, %arg1 : i32, i32
  }
  func.func @transform_1(%arg0: i32, %arg1: i32) -> (i32, i32) {
    %c0_i32 = arith.constant 0 : i32
    %c0_i32_0 = arith.constant 0 : i32
    return %arg1, %c0_i32 : i32, i32
  }
  func.func @transform_2(%arg0: i32, %arg1: i32) -> (i32, i32) {
    %c0_i32 = arith.constant 0 : i32
    %c0_i32_0 = arith.constant 0 : i32
    return %arg0, %c0_i32 : i32, i32
  }
  func.func @transform_3(%arg0: i32, %arg1: i32) -> (i32, i32) {
    %c0_i32 = arith.constant 0 : i32
    %c0_i32_0 = arith.constant 0 : i32
    %c0_i32_1 = arith.constant 0 : i32
    return %c0_i32, %c0_i32_0 : i32, i32
  }
  func.func @transform_4(%arg0: i32, %arg1: i32) -> (i32, i32) {
    %c0_i32 = arith.constant 0 : i32
    %c0_i32_0 = arith.constant 0 : i32
    %c0_i32_1 = arith.constant 0 : i32
    return %c0_i32, %c0_i32_0 : i32, i32
  }
  func.func @transform_5(%arg0: i32, %arg1: i32) -> (i32, i32) {
    %c0_i32 = arith.constant 0 : i32
    %c0_i32_0 = arith.constant 0 : i32
    %c0_i32_1 = arith.constant 0 : i32
    return %c0_i32, %c0_i32_0 : i32, i32
  }
  func.func @transform_6(%arg0: i32, %arg1: i32) -> (i32, i32) {
    %c0_i32 = arith.constant 0 : i32
    %c0_i32_0 = arith.constant 0 : i32
    %c0_i32_1 = arith.constant 0 : i32
    return %c0_i32, %c0_i32_0 : i32, i32
  }
  func.func @transform_7(%arg0: i32, %arg1: i32) -> (i32, i32) {
    %c0_i32 = arith.constant 0 : i32
    %c0_i32_0 = arith.constant 0 : i32
    return %arg0, %c0_i32 : i32, i32
  }
}

</mosaic_0001>

<llo_original>
// kernel: tpu_custom_call.1
$region0: #{tpu_custom_call.1}
  #allocation0 [shape = 'u32[]', space=smem, size = 0x4, offset = 0x4, fixed_abs, tag = 'smem constant byte address 0x4 - core index']
  #allocation1 [shape = 'u32[144,128]{1,0:T(1,128)}', space=vmem, size = 0x12000, scoped, tag = 'internal scratch']
  #allocation2 [shape = 'f32[128,128]{1,0:T(8,128)}', space=vmem, size = 0x10000, scoped, tag = 'scratch operand']
  %s0 = inlined_call_operand.hbm [shape: bf16[128,128], index: 0, kind: input, shape index: {}]
  %s1 = inlined_call_operand.hbm [shape: bf16[128,128], index: 1, kind: input, shape index: {}]
  %s2 = inlined_call_operand.hbm [shape: bf16[128,128], index: 2, kind: input, shape index: {}]
  %s3 = inlined_call_operand.hbm [shape: bf16[128,128], index: 3, kind: input, shape index: {}]
  %s4 = inlined_call_operand.hbm [shape: bf16[128,128], index: 4, kind: input, shape index: {}]
  %s5 = inlined_call_operand.vmem [shape: f32[1,128], index: 5, kind: input, shape index: {}]
  %s6 = inlined_call_operand.vmem [shape: f32[1,128], index: 6, kind: input, shape index: {}]
  %s7 = inlined_call_operand.hbm [shape: bf16[128,128], index: 7, kind: output, shape index: {}]
  %s8 = sld [smem:[#allocation0]]
  $region66: #{tpu_custom_call.1} parent=0
    _
  %s10 = ssub.s32 1, %s8
  %s11 = scalar_select 0, %s10, %s8
  $region1: #{tpu_custom_call.1} parent=0
    #allocation3 [shape = 'u8[32768]{0}', space=vmem, size = 0x8000, scoped, tag = 'input window, operand 0, single buffered']
    #allocation4 [shape = 's32[1]{0}', space=sflag, size = 0x4, scoped, tag = 'scoped memory for tpu_custom_call.1']
    #allocation5 [shape = 's32[1]{0}', space=sflag, size = 0x4, scoped, tag = 'scoped memory for tpu_custom_call.1']
    #allocation6 [shape = 'u8[32768]{0}', space=vmem, size = 0x8000, scoped, tag = 'input window, operand 1, single buffered']
    #allocation7 [shape = 's32[1]{0}', space=sflag, size = 0x4, scoped, tag = 'scoped memory for tpu_custom_call.1']
    #allocation8 [shape = 'u8[32768]{0}', space=vmem, size = 0x8000, scoped, tag = 'input window, operand 2, single buffered']
    #allocation9 [shape = 'u8[32768]{0}', space=vmem, size = 0x8000, scoped, tag = 'input window, operand 3, single buffered']
    #allocation10 [shape = 's32[1]{0}', space=sflag, size = 0x4, scoped, tag = 'scoped memory for tpu_custom_call.1']
    #allocation11 [shape = 'u8[32768]{0}', space=vmem, size = 0x8000, scoped, tag = 'input window, operand 4, single buffered']
    #allocation12 [shape = 'u8[32768]{0}', space=vmem, size = 0x8000, scoped, tag = 'output window, operand 0, single buffered']
    %12 = vsyncpa [#allocation4], 0
    %13 = vsyncpa [#allocation7], 0
    %14 = vsyncpa [#allocation10], 0
    %15 = vsyncpa [#allocation5], 0
    // Predicated region
    $region2: #{tpu_custom_call.1} parent=1 // pred_check
      _
    $region3: #{tpu_custom_call.1} parent=1 // pred_check_branch
      %17 = sbr.rel (0) target = $region5
    $region4: #{tpu_custom_call.1} parent=1 // pred_region
      %s19 = ssub.s32 1024, 1024
      %20 = vsyncadd [#allocation4], %s19
      %s21 = sshll.u32 [#allocation3], 4
      %s22 = int_to_ptr.vmem [resolvable:$true] %s21
      %27 = dma.hbm_to_vmem [thread:$0]  %s0, 1024, %s22, [#allocation4], 64, 64, 4
    $region5: #{tpu_custom_call.1} parent=1 // pred_fallthru
      _
    // Predicated region
    $region6: #{tpu_custom_call.1} parent=1 // pred_check
      _
    $region7: #{tpu_custom_call.1} parent=1 // pred_check_branch
      %29 = sbr.rel (0) target = $region9
    $region8: #{tpu_custom_call.1} parent=1 // pred_region
      %s31 = ssub.s32 1024, 1024
      %32 = vsyncadd [#allocation7], %s31
      %s33 = sshll.u32 [#allocation6], 4
      %s34 = int_to_ptr.vmem [resolvable:$true] %s33
      %39 = dma.hbm_to_vmem [thread:$0]  %s1, 1024, %s34, [#allocation7], 64, 64, 4
    $region9: #{tpu_custom_call.1} parent=1 // pred_fallthru
      _
    // Predicated region
    $region10: #{tpu_custom_call.1} parent=1 // pred_check
      _
    $region11: #{tpu_custom_call.1} parent=1 // pred_check_branch
      %41 = sbr.rel (0) target = $region13
    $region12: #{tpu_custom_call.1} parent=1 // pred_region
      %s43 = ssub.s32 1024, 1024
      %44 = vsyncadd [#allocation7], %s43
      %s45 = sshll.u32 [#allocation8], 4
      %s46 = int_to_ptr.vmem [resolvable:$true] %s45
      %51 = dma.hbm_to_vmem [thread:$0]  %s2, 1024, %s46, [#allocation7], 64, 64, 4
    $region13: #{tpu_custom_call.1} parent=1 // pred_fallthru
      _
    // Predicated region
    $region14: #{tpu_custom_call.1} parent=1 // pred_check
      _
    $region15: #{tpu_custom_call.1} parent=1 // pred_check_branch
      %53 = sbr.rel (0) target = $region17
    $region16: #{tpu_custom_call.1} parent=1 // pred_region
      %s55 = ssub.s32 1024, 1024
      %56 = vsyncadd [#allocation10], %s55
      %s57 = sshll.u32 [#allocation9], 4
      %s58 = int_to_ptr.vmem [resolvable:$true] %s57
      %63 = dma.hbm_to_vmem [thread:$0]  %s3, 1024, %s58, [#allocation10], 64, 64, 4
    $region17: #{tpu_custom_call.1} parent=1 // pred_fallthru
      _
    // Predicated region
    $region18: #{tpu_custom_call.1} parent=1 // pred_check
      _
    $region19: #{tpu_custom_call.1} parent=1 // pred_check_branch
      %65 = sbr.rel (0) target = $region21
    $region20: #{tpu_custom_call.1} parent=1 // pred_region
      %s67 = ssub.s32 1024, 1024
      %68 = vsyncadd [#allocation10], %s67
      %s69 = sshll.u32 [#allocation11], 4
      %s70 = int_to_ptr.vmem [resolvable:$true] %s69
      %75 = dma.hbm_to_vmem [thread:$0]  %s4, 1024, %s70, [#allocation10], 64, 64, 4
    $region21: #{tpu_custom_call.1} parent=1 // pred_fallthru
      _
    // Predicated region
    $region22: #{tpu_custom_call.1} parent=1 // pred_check
      _
    $region23: #{tpu_custom_call.1} parent=1 // pred_check_branch
      %77 = sbr.rel (0) target = $region25
    $region24: #{tpu_custom_call.1} parent=1 // pred_region
      _
    $region25: #{tpu_custom_call.1} parent=1 // pred_fallthru
      _
    // Predicated region
    $region26: #{tpu_custom_call.1} parent=1 // pred_check
      _
    $region27: #{tpu_custom_call.1} parent=1 // pred_check_branch
      %79 = sbr.rel (0) target = $region29
    $region28: #{tpu_custom_call.1} parent=1 // pred_region
      _
    $region29: #{tpu_custom_call.1} parent=1 // pred_fallthru
      _
    // Predicated region
    $region30: #{tpu_custom_call.1} parent=1 // pred_check
      _
    $region31: #{tpu_custom_call.1} parent=1 // pred_check_branch
      %81 = sbr.rel (0) target = $region33
    $region32: #{tpu_custom_call.1} parent=1 // pred_region
      %82 = dma.done [#allocation4], 1024
    $region33: #{tpu_custom_call.1} parent=1 // pred_fallthru
      _
    // Predicated region
    $region34: #{tpu_custom_call.1} parent=1 // pred_check
      _
    $region35: #{tpu_custom_call.1} parent=1 // pred_check_branch
      %84 = sbr.rel (0) target = $region37
    $region36: #{tpu_custom_call.1} parent=1 // pred_region
      %85 = dma.done [#allocation7], 1024
    $region37: #{tpu_custom_call.1} parent=1 // pred_fallthru
      _
    // Predicated region
    $region38: #{tpu_custom_call.1} parent=1 // pred_check
      _
    $region39: #{tpu_custom_call.1} parent=1 // pred_check_branch
      %87 = sbr.rel (0) target = $region41
    $region40: #{tpu_custom_call.1} parent=1 // pred_region
      %88 = dma.done [#allocation7], 1024
    $region41: #{tpu_custom_call.1} parent=1 // pred_fallthru
      _
    // Predicated region
    $region42: #{tpu_custom_call.1} parent=1 // pred_check
      _
    $region43: #{tpu_custom_call.1} parent=1 // pred_check_branch
      %90 = sbr.rel (0) target = $region45
    $region44: #{tpu_custom_call.1} parent=1 // pred_region
      %91 = dma.done [#allocation10], 1024
    $region45: #{tpu_custom_call.1} parent=1 // pred_fallthru
      _
    // Predicated region
    $region46: #{tpu_custom_call.1} parent=1 // pred_check
      _
    $region47: #{tpu_custom_call.1} parent=1 // pred_check_branch
      %93 = sbr.rel (0) target = $region49
    $region48: #{tpu_custom_call.1} parent=1 // pred_region
      %94 = dma.done [#allocation10], 1024
    $region49: #{tpu_custom_call.1} parent=1 // pred_fallthru
      _
    %p96 = scmp.eq.s32.totalorder 0, 0
    // Predicated region
    $region50: #{tpu_custom_call.1} parent=1 // pred_check
      %p97 = pneg %p96
    $region51: #{tpu_custom_call.1} parent=1 // pred_check_branch
      %99 = sbr.rel (%p97) target = $region53
    $region52: #{tpu_custom_call.1} parent=1 // pred_region
      %100 = vst [vmem:[#allocation2] sm:$0xff] 0.0
      %101 = vst [vmem:[#allocation2 + $0x8] sm:$0xff] 0.0
      %102 = vst [vmem:[#allocation2 + $0x10] sm:$0xff] 0.0
      %103 = vst [vmem:[#allocation2 + $0x18] sm:$0xff] 0.0
      %104 = vst [vmem:[#allocation2 + $0x20] sm:$0xff] 0.0
      %105 = vst [vmem:[#allocation2 + $0x28] sm:$0xff] 0.0
      %106 = vst [vmem:[#allocation2 + $0x30] sm:$0xff] 0.0
      %107 = vst [vmem:[#allocation2 + $0x38] sm:$0xff] 0.0
      %108 = vst [vmem:[#allocation2 + $0x40] sm:$0xff] 0.0
      %109 = vst [vmem:[#allocation2 + $0x48] sm:$0xff] 0.0
      %110 = vst [vmem:[#allocation2 + $0x50] sm:$0xff] 0.0
      %111 = vst [vmem:[#allocation2 + $0x58] sm:$0xff] 0.0
      %112 = vst [vmem:[#allocation2 + $0x60] sm:$0xff] 0.0
      %113 = vst [vmem:[#allocation2 + $0x68] sm:$0xff] 0.0
      %114 = vst [vmem:[#allocation2 + $0x70] sm:$0xff] 0.0
      %115 = vst [vmem:[#allocation2 + $0x78] sm:$0xff] 0.0
    $region53: #{tpu_custom_call.1} parent=1 // pred_fallthru
      _
    %v116 = vld [vmem:[#allocation2] sm:$0xff]
    %v117 = vld [vmem:[#allocation2 + $0x8] sm:$0xff]
    %v118 = vld [vmem:[#allocation2 + $0x10] sm:$0xff]
    %v119 = vld [vmem:[#allocation2 + $0x18] sm:$0xff]
    %v120 = vld [vmem:[#allocation2 + $0x20] sm:$0xff]
    %v121 = vld [vmem:[#allocation2 + $0x28] sm:$0xff]
    %v122 = vld [vmem:[#allocation2 + $0x30] sm:$0xff]
    %v123 = vld [vmem:[#allocation2 + $0x38] sm:$0xff]
    %v124 = vld [vmem:[#allocation2 + $0x40] sm:$0xff]
    %v125 = vld [vmem:[#allocation2 + $0x48] sm:$0xff]
    %v126 = vld [vmem:[#allocation2 + $0x50] sm:$0xff]
    %v127 = vld [vmem:[#allocation2 + $0x58] sm:$0xff]
    %v128 = vld [vmem:[#allocation2 + $0x60] sm:$0xff]
    %v129 = vld [vmem:[#allocation2 + $0x68] sm:$0xff]
    %v130 = vld [vmem:[#allocation2 + $0x70] sm:$0xff]
    %v131 = vld [vmem:[#allocation2 + $0x78] sm:$0xff]
    %v132 = vld [vmem:[#allocation3] sm:$0xf]
    %v133 = vld [vmem:[#allocation3 + $0x4] sm:$0xf]
    %v134 = vld [vmem:[#allocation3 + $0x8] sm:$0xf]
    %v135 = vld [vmem:[#allocation3 + $0xc] sm:$0xf]
    %v136 = vld [vmem:[#allocation3 + $0x10] sm:$0xf]
    %v137 = vld [vmem:[#allocation3 + $0x14] sm:$0xf]
    %v138 = vld [vmem:[#allocation3 + $0x18] sm:$0xf]
    %v139 = vld [vmem:[#allocation3 + $0x1c] sm:$0xf]
    %v140 = vld [vmem:[#allocation3 + $0x20] sm:$0xf]
    %v141 = vld [vmem:[#allocation3 + $0x24] sm:$0xf]
    %v142 = vld [vmem:[#allocation3 + $0x28] sm:$0xf]
    %v143 = vld [vmem:[#allocation3 + $0x2c] sm:$0xf]
    %v144 = vld [vmem:[#allocation3 + $0x30] sm:$0xf]
    %v145 = vld [vmem:[#allocation3 + $0x34] sm:$0xf]
    %v146 = vld [vmem:[#allocation3 + $0x38] sm:$0xf]
    %v147 = vld [vmem:[#allocation3 + $0x3c] sm:$0xf]
    %v148 = vld [vmem:[#allocation6] sm:$0xf]
    %v149 = vld [vmem:[#allocation6 + $0x4] sm:$0xf]
    %v150 = vld [vmem:[#allocation6 + $0x8] sm:$0xf]
    %v151 = vld [vmem:[#allocation6 + $0xc] sm:$0xf]
    %v152 = vld [vmem:[#allocation6 + $0x10] sm:$0xf]
    %v153 = vld [vmem:[#allocation6 + $0x14] sm:$0xf]
    %v154 = vld [vmem:[#allocation6 + $0x18] sm:$0xf]
    %v155 = vld [vmem:[#allocation6 + $0x1c] sm:$0xf]
    %v156 = vld [vmem:[#allocation6 + $0x20] sm:$0xf]
    %v157 = vld [vmem:[#allocation6 + $0x24] sm:$0xf]
    %v158 = vld [vmem:[#allocation6 + $0x28] sm:$0xf]
    %v159 = vld [vmem:[#allocation6 + $0x2c] sm:$0xf]
    %v160 = vld [vmem:[#allocation6 + $0x30] sm:$0xf]
    %v161 = vld [vmem:[#allocation6 + $0x34] sm:$0xf]
    %v162 = vld [vmem:[#allocation6 + $0x38] sm:$0xf]
    %v163 = vld [vmem:[#allocation6 + $0x3c] sm:$0xf]
    %v180 = vunpack.c.l.b16 %v132
    %v181 = vunpack.c.l.b16 %v133
    %v182 = vunpack.c.l.b16 %v134
    %v183 = vunpack.c.l.b16 %v135
    %v184 = vunpack.c.l.b16 %v136
    %v185 = vunpack.c.l.b16 %v137
    %v186 = vunpack.c.l.b16 %v138
    %v187 = vunpack.c.l.b16 %v139
    %v188 = vunpack.c.l.b16 %v140
    %v189 = vunpack.c.l.b16 %v141
    %v190 = vunpack.c.l.b16 %v142
    %v191 = vunpack.c.l.b16 %v143
    %v192 = vunpack.c.l.b16 %v144
    %v193 = vunpack.c.l.b16 %v145
    %v194 = vunpack.c.l.b16 %v146
    %v195 = vunpack.c.l.b16 %v147
    %v196 = vpack.c.b16 %v181, %v180
    %v197 = vpack.c.b16 %v183, %v182
    %v198 = vpack.c.b16 %v185, %v184
    %v199 = vpack.c.b16 %v187, %v186
    %v200 = vpack.c.b16 %v189, %v188
    %v201 = vpack.c.b16 %v191, %v190
    %v202 = vpack.c.b16 %v193, %v192
    %v203 = vpack.c.b16 %v195, %v194
    %v228 = vunpack.c.l.b16 %v148
    %v229 = vunpack.c.l.b16 %v149
    %v230 = vunpack.c.l.b16 %v150
    %v231 = vunpack.c.l.b16 %v151
    %v232 = vunpack.c.l.b16 %v152
    %v233 = vunpack.c.l.b16 %v153
    %v234 = vunpack.c.l.b16 %v154
    %v235 = vunpack.c.l.b16 %v155
    %v236 = vunpack.c.l.b16 %v156
    %v237 = vunpack.c.l.b16 %v157
    %v238 = vunpack.c.l.b16 %v158
    %v239 = vunpack.c.l.b16 %v159
    %v240 = vunpack.c.l.b16 %v160
    %v241 = vunpack.c.l.b16 %v161
    %v242 = vunpack.c.l.b16 %v162
    %v243 = vunpack.c.l.b16 %v163
    %v244 = vpack.c.b16 %v229, %v228
    %v245 = vpack.c.b16 %v231, %v230
    %v246 = vpack.c.b16 %v233, %v232
    %v247 = vpack.c.b16 %v235, %v234
    %v248 = vpack.c.b16 %v237, %v236
    %v249 = vpack.c.b16 %v239, %v238
    %v250 = vpack.c.b16 %v241, %v240
    %v251 = vpack.c.b16 %v243, %v242
    %260 = vmatprep.subr.bf16.mxu0 0
    %261 = vmatpush1.bf16.msra.mxu0 %v244
    %262 = vmatprep.subr.bf16.mxu0 0
    %263 = vmatpush1.bf16.msra.mxu0 %v245
    %264 = vmatprep.subr.bf16.mxu0 0
    %265 = vmatpush1.bf16.msra.mxu0 %v246
    %266 = vmatprep.subr.bf16.mxu0 0
    %267 = vmatpush1.bf16.msra.mxu0 %v247
    %268 = vmatprep.subr.bf16.mxu0 0
    %269 = vmatpush1.bf16.msra.mxu0 %v248
    %270 = vmatprep.subr.bf16.mxu0 0
    %271 = vmatpush1.bf16.msra.mxu0 %v249
    %272 = vmatprep.subr.bf16.mxu0 0
    %273 = vmatpush1.bf16.msra.mxu0 %v250
    %274 = vmatprep.subr.bf16.mxu0 0
    %275 = vmatpush1.bf16.msra.mxu0 %v251
    %276 = vmatprep.subr.bf16.mxu0 0
    %277 = vmatpush1.bf16.msra.mxu0 0
    %278 = vmatprep.subr.bf16.mxu0 0
    %279 = vmatpush1.bf16.msra.mxu0 0
    %280 = vmatprep.subr.bf16.mxu0 0
    %281 = vmatpush1.bf16.msra.mxu0 0
    %282 = vmatprep.subr.bf16.mxu0 0
    %283 = vmatpush1.bf16.msra.mxu0 0
    %284 = vmatprep.subr.bf16.mxu0 0
    %285 = vmatpush1.bf16.msra.mxu0 0
    %286 = vmatprep.subr.bf16.mxu0 0
    %287 = vmatpush1.bf16.msra.mxu0 0
    %288 = vmatprep.subr.bf16.mxu0 0
    %289 = vmatpush1.bf16.msra.mxu0 0
    %290 = vmatprep.subr.bf16.mxu0 0
    %291 = vmatpush1.bf16.msra.mxu0 0
    %292 = vmatprep.mubr.bf16.mxu0 0
    %293 = vmatmul.mubr.bf16.gmra.mrb[0].mxu0 %v196
    %v294 = vpop.f32.mrb[0].mxu0
    %v295 = vadd.f32 0.0, %v294
    %v296 = vpop.f32.mrb[0].mxu0
    %v297 = vpop.f32.mrb[0].mxu0
    %v298 = vadd.f32 0.0, %v297
    %v299 = vpop.f32.mrb[0].mxu0
    %300 = vmatprep.mubr.bf16.mxu0 0
    %301 = vmatmul.mubr.bf16.gmra.mrb[0].mxu0 %v197
    %v302 = vpop.f32.mrb[0].mxu0
    %v303 = vadd.f32 0.0, %v302
    %v304 = vpop.f32.mrb[0].mxu0
    %v305 = vpop.f32.mrb[0].mxu0
    %v306 = vadd.f32 0.0, %v305
    %v307 = vpop.f32.mrb[0].mxu0
    %308 = vmatprep.mubr.bf16.mxu0 0
    %309 = vmatmul.mubr.bf16.gmra.mrb[0].mxu0 %v198
    %v310 = vpop.f32.mrb[0].mxu0
    %v311 = vadd.f32 0.0, %v310
    %v312 = vpop.f32.mrb[0].mxu0
    %v313 = vpop.f32.mrb[0].mxu0
    %v314 = vadd.f32 0.0, %v313
    %v315 = vpop.f32.mrb[0].mxu0
    %316 = vmatprep.mubr.bf16.mxu0 0
    %317 = vmatmul.mubr.bf16.gmra.mrb[0].mxu0 %v199
    %v318 = vpop.f32.mrb[0].mxu0
    %v319 = vadd.f32 0.0, %v318
    %v320 = vpop.f32.mrb[0].mxu0
    %v321 = vpop.f32.mrb[0].mxu0
    %v322 = vadd.f32 0.0, %v321
    %v323 = vpop.f32.mrb[0].mxu0
    %324 = vmatprep.mubr.bf16.mxu0 0
    %325 = vmatmul.mubr.bf16.gmra.mrb[0].mxu0 %v200
    %v326 = vpop.f32.mrb[0].mxu0
    %v327 = vadd.f32 0.0, %v326
    %v328 = vpop.f32.mrb[0].mxu0
    %v329 = vpop.f32.mrb[0].mxu0
    %v330 = vadd.f32 0.0, %v329
    %v331 = vpop.f32.mrb[0].mxu0
    %332 = vmatprep.mubr.bf16.mxu0 0
    %333 = vmatmul.mubr.bf16.gmra.mrb[0].mxu0 %v201
    %v334 = vpop.f32.mrb[0].mxu0
    %v335 = vadd.f32 0.0, %v334
    %v336 = vpop.f32.mrb[0].mxu0
    %v337 = vpop.f32.mrb[0].mxu0
    %v338 = vadd.f32 0.0, %v337
    %v339 = vpop.f32.mrb[0].mxu0
    %340 = vmatprep.mubr.bf16.mxu0 0
    %341 = vmatmul.mubr.bf16.gmra.mrb[0].mxu0 %v202
    %v342 = vpop.f32.mrb[0].mxu0
    %v343 = vadd.f32 0.0, %v342
    %v344 = vpop.f32.mrb[0].mxu0
    %v345 = vpop.f32.mrb[0].mxu0
    %v346 = vadd.f32 0.0, %v345
    %v347 = vpop.f32.mrb[0].mxu0
    %348 = vmatprep.mubr.bf16.mxu0 0
    %349 = vmatmul.mubr.bf16.gmra.mrb[0].mxu0 %v203
    %v350 = vpop.f32.mrb[0].mxu0
    %v351 = vadd.f32 0.0, %v350
    %v352 = vpop.f32.mrb[0].mxu0
    %v353 = vpop.f32.mrb[0].mxu0
    %v354 = vadd.f32 0.0, %v353
    %v355 = vpop.f32.mrb[0].mxu0
    %356 = vdwg.mxu0
    %v357 = vadd.f32 %v116, %v295
    %v358 = vadd.f32 %v117, %v298
    %v359 = vadd.f32 %v118, %v303
    %v360 = vadd.f32 %v119, %v306
    %v361 = vadd.f32 %v120, %v311
    %v362 = vadd.f32 %v121, %v314
    %v363 = vadd.f32 %v122, %v319
    %v364 = vadd.f32 %v123, %v322
    %v365 = vadd.f32 %v124, %v327
    %v366 = vadd.f32 %v125, %v330
    %v367 = vadd.f32 %v126, %v335
    %v368 = vadd.f32 %v127, %v338
    %v369 = vadd.f32 %v128, %v343
    %v370 = vadd.f32 %v129, %v346
    %v371 = vadd.f32 %v130, %v351
    %v372 = vadd.f32 %v131, %v354
    %373 = vst [vmem:[#allocation2] sm:$0xff] %v357
    %374 = vst [vmem:[#allocation2 + $0x8] sm:$0xff] %v358
    %375 = vst [vmem:[#allocation2 + $0x10] sm:$0xff] %v359
    %376 = vst [vmem:[#allocation2 + $0x18] sm:$0xff] %v360
    %377 = vst [vmem:[#allocation2 + $0x20] sm:$0xff] %v361
    %378 = vst [vmem:[#allocation2 + $0x28] sm:$0xff] %v362
    %379 = vst [vmem:[#allocation2 + $0x30] sm:$0xff] %v363
    %380 = vst [vmem:[#allocation2 + $0x38] sm:$0xff] %v364
    %381 = vst [vmem:[#allocation2 + $0x40] sm:$0xff] %v365
    %382 = vst [vmem:[#allocation2 + $0x48] sm:$0xff] %v366
    %383 = vst [vmem:[#allocation2 + $0x50] sm:$0xff] %v367
    %384 = vst [vmem:[#allocation2 + $0x58] sm:$0xff] %v368
    %385 = vst [vmem:[#allocation2 + $0x60] sm:$0xff] %v369
    %386 = vst [vmem:[#allocation2 + $0x68] sm:$0xff] %v370
    %387 = vst [vmem:[#allocation2 + $0x70] sm:$0xff] %v371
    %388 = vst [vmem:[#allocation2 + $0x78] sm:$0xff] %v372
    // Predicated region
    $region54: #{tpu_custom_call.1} parent=1 // pred_check
      %p389 = pneg %p96
    $region55: #{tpu_custom_call.1} parent=1 // pred_check_branch
      %391 = sbr.rel (%p389) target = $region57
    $region56: #{tpu_custom_call.1} parent=1 // pred_region
      %v392 = vld [vmem:[#allocation2] sm:$0xff]
      %v393 = vld [vmem:[#allocation2 + $0x8] sm:$0xff]
      %v394 = vld [vmem:[#allocation2 + $0x10] sm:$0xff]
      %v395 = vld [vmem:[#allocation2 + $0x18] sm:$0xff]
      %v396 = vld [vmem:[#allocation2 + $0x20] sm:$0xff]
      %v397 = vld [vmem:[#allocation2 + $0x28] sm:$0xff]
      %v398 = vld [vmem:[#allocation2 + $0x30] sm:$0xff]
      %v399 = vld [vmem:[#allocation2 + $0x38] sm:$0xff]
      %v400 = vld [vmem:[#allocation2 + $0x40] sm:$0xff]
      %v401 = vld [vmem:[#allocation2 + $0x48] sm:$0xff]
      %v402 = vld [vmem:[#allocation2 + $0x50] sm:$0xff]
      %v403 = vld [vmem:[#allocation2 + $0x58] sm:$0xff]
      %v404 = vld [vmem:[#allocation2 + $0x60] sm:$0xff]
      %v405 = vld [vmem:[#allocation2 + $0x68] sm:$0xff]
      %v406 = vld [vmem:[#allocation2 + $0x70] sm:$0xff]
      %v407 = vld [vmem:[#allocation2 + $0x78] sm:$0xff]
      %v408 = vpack.c.bf16 %v393, %v392
      %v409 = vpack.c.bf16 %v395, %v394
      %v410 = vpack.c.bf16 %v397, %v396
      %v411 = vpack.c.bf16 %v399, %v398
      %v412 = vpack.c.bf16 %v401, %v400
      %v413 = vpack.c.bf16 %v403, %v402
      %v414 = vpack.c.bf16 %v405, %v404
      %v415 = vpack.c.bf16 %v407, %v406
      %v416 = vld [vmem:[#allocation9] sm:$0xf]
      %v417 = vld [vmem:[#allocation9 + $0x4] sm:$0xf]
      %v418 = vld [vmem:[#allocation9 + $0x8] sm:$0xf]
      %v419 = vld [vmem:[#allocation9 + $0xc] sm:$0xf]
      %v420 = vld [vmem:[#allocation9 + $0x10] sm:$0xf]
      %v421 = vld [vmem:[#allocation9 + $0x14] sm:$0xf]
      %v422 = vld [vmem:[#allocation9 + $0x18] sm:$0xf]
      %v423 = vld [vmem:[#allocation9 + $0x1c] sm:$0xf]
      %v424 = vld [vmem:[#allocation9 + $0x20] sm:$0xf]
      %v425 = vld [vmem:[#allocation9 + $0x24] sm:$0xf]
      %v426 = vld [vmem:[#allocation9 + $0x28] sm:$0xf]
      %v427 = vld [vmem:[#allocation9 + $0x2c] sm:$0xf]
      %v428 = vld [vmem:[#allocation9 + $0x30] sm:$0xf]
      %v429 = vld [vmem:[#allocation9 + $0x34] sm:$0xf]
      %v430 = vld [vmem:[#allocation9 + $0x38] sm:$0xf]
      %v431 = vld [vmem:[#allocation9 + $0x3c] sm:$0xf]
      %v432 = vld [vmem:[#allocation8] sm:$0xf]
      %v433 = vld [vmem:[#allocation8 + $0x4] sm:$0xf]
      %v434 = vld [vmem:[#allocation8 + $0x8] sm:$0xf]
      %v435 = vld [vmem:[#allocation8 + $0xc] sm:$0xf]
      %v436 = vld [vmem:[#allocation8 + $0x10] sm:$0xf]
      %v437 = vld [vmem:[#allocation8 + $0x14] sm:$0xf]
      %v438 = vld [vmem:[#allocation8 + $0x18] sm:$0xf]
      %v439 = vld [vmem:[#allocation8 + $0x1c] sm:$0xf]
      %v440 = vld [vmem:[#allocation8 + $0x20] sm:$0xf]
      %v441 = vld [vmem:[#allocation8 + $0x24] sm:$0xf]
      %v442 = vld [vmem:[#allocation8 + $0x28] sm:$0xf]
      %v443 = vld [vmem:[#allocation8 + $0x2c] sm:$0xf]
      %v444 = vld [vmem:[#allocation8 + $0x30] sm:$0xf]
      %v445 = vld [vmem:[#allocation8 + $0x34] sm:$0xf]
      %v446 = vld [vmem:[#allocation8 + $0x38] sm:$0xf]
      %v447 = vld [vmem:[#allocation8 + $0x3c] sm:$0xf]
      %v448 = vld [vmem:[#allocation11] sm:$0xf]
      %v449 = vld [vmem:[#allocation11 + $0x4] sm:$0xf]
      %v450 = vld [vmem:[#allocation11 + $0x8] sm:$0xf]
      %v451 = vld [vmem:[#allocation11 + $0xc] sm:$0xf]
      %v452 = vld [vmem:[#allocation11 + $0x10] sm:$0xf]
      %v453 = vld [vmem:[#allocation11 + $0x14] sm:$0xf]
      %v454 = vld [vmem:[#allocation11 + $0x18] sm:$0xf]
      %v455 = vld [vmem:[#allocation11 + $0x1c] sm:$0xf]
      %v456 = vld [vmem:[#allocation11 + $0x20] sm:$0xf]
      %v457 = vld [vmem:[#allocation11 + $0x24] sm:$0xf]
      %v458 = vld [vmem:[#allocation11 + $0x28] sm:$0xf]
      %v459 = vld [vmem:[#allocation11 + $0x2c] sm:$0xf]
      %v460 = vld [vmem:[#allocation11 + $0x30] sm:$0xf]
      %v461 = vld [vmem:[#allocation11 + $0x34] sm:$0xf]
      %v462 = vld [vmem:[#allocation11 + $0x38] sm:$0xf]
      %v463 = vld [vmem:[#allocation11 + $0x3c] sm:$0xf]
      %v480 = vunpack.c.l.b16 %v432
      %v481 = vunpack.c.l.b16 %v433
      %v482 = vunpack.c.l.b16 %v434
      %v483 = vunpack.c.l.b16 %v435
      %v484 = vunpack.c.l.b16 %v436
      %v485 = vunpack.c.l.b16 %v437
      %v486 = vunpack.c.l.b16 %v438
      %v487 = vunpack.c.l.b16 %v439
      %v488 = vunpack.c.l.b16 %v440
      %v489 = vunpack.c.l.b16 %v441
      %v490 = vunpack.c.l.b16 %v442
      %v491 = vunpack.c.l.b16 %v443
      %v492 = vunpack.c.l.b16 %v444
      %v493 = vunpack.c.l.b16 %v445
      %v494 = vunpack.c.l.b16 %v446
      %v495 = vunpack.c.l.b16 %v447
      %v496 = vpack.c.b16 %v481, %v480
      %v497 = vpack.c.b16 %v483, %v482
      %v498 = vpack.c.b16 %v485, %v484
      %v499 = vpack.c.b16 %v487, %v486
      %v500 = vpack.c.b16 %v489, %v488
      %v501 = vpack.c.b16 %v491, %v490
      %v502 = vpack.c.b16 %v493, %v492
      %v503 = vpack.c.b16 %v495, %v494
      %v528 = vunpack.c.l.b16 %v448
      %v529 = vunpack.c.l.b16 %v449
      %v530 = vunpack.c.l.b16 %v450
      %v531 = vunpack.c.l.b16 %v451
      %v532 = vunpack.c.l.b16 %v452
      %v533 = vunpack.c.l.b16 %v453
      %v534 = vunpack.c.l.b16 %v454
      %v535 = vunpack.c.l.b16 %v455
      %v536 = vunpack.c.l.b16 %v456
      %v537 = vunpack.c.l.b16 %v457
      %v538 = vunpack.c.l.b16 %v458
      %v539 = vunpack.c.l.b16 %v459
      %v540 = vunpack.c.l.b16 %v460
      %v541 = vunpack.c.l.b16 %v461
      %v542 = vunpack.c.l.b16 %v462
      %v543 = vunpack.c.l.b16 %v463
      %v544 = vpack.c.b16 %v529, %v528
      %v545 = vpack.c.b16 %v531, %v530
      %v546 = vpack.c.b16 %v533, %v532
      %v547 = vpack.c.b16 %v535, %v534
      %v548 = vpack.c.b16 %v537, %v536
      %v549 = vpack.c.b16 %v539, %v538
      %v550 = vpack.c.b16 %v541, %v540
      %v551 = vpack.c.b16 %v543, %v542
      %560 = vmatprep.subr.bf16.mxu0 0
      %561 = vmatpush1.bf16.msra.mxu0 %v544
      %562 = vmatprep.subr.bf16.mxu0 0
      %563 = vmatpush1.bf16.msra.mxu0 %v545
      %564 = vmatprep.subr.bf16.mxu0 0
      %565 = vmatpush1.bf16.msra.mxu0 %v546
      %566 = vmatprep.subr.bf16.mxu0 0
      %567 = vmatpush1.bf16.msra.mxu0 %v547
      %568 = vmatprep.subr.bf16.mxu0 0
      %569 = vmatpush1.bf16.msra.mxu0 %v548
      %570 = vmatprep.subr.bf16.mxu0 0
      %571 = vmatpush1.bf16.msra.mxu0 %v549
      %572 = vmatprep.subr.bf16.mxu0 0
      %573 = vmatpush1.bf16.msra.mxu0 %v550
      %574 = vmatprep.subr.bf16.mxu0 0
      %575 = vmatpush1.bf16.msra.mxu0 %v551
      %576 = vmatprep.subr.bf16.mxu0 0
      %577 = vmatpush1.bf16.msra.mxu0 0
      %578 = vmatprep.subr.bf16.mxu0 0
      %579 = vmatpush1.bf16.msra.mxu0 0
      %580 = vmatprep.subr.bf16.mxu0 0
      %581 = vmatpush1.bf16.msra.mxu0 0
      %582 = vmatprep.subr.bf16.mxu0 0
      %583 = vmatpush1.bf16.msra.mxu0 0
      %584 = vmatprep.subr.bf16.mxu0 0
      %585 = vmatpush1.bf16.msra.mxu0 0
      %586 = vmatprep.subr.bf16.mxu0 0
      %587 = vmatpush1.bf16.msra.mxu0 0
      %588 = vmatprep.subr.bf16.mxu0 0
      %589 = vmatpush1.bf16.msra.mxu0 0
      %590 = vmatprep.subr.bf16.mxu0 0
      %591 = vmatpush1.bf16.msra.mxu0 0
      %592 = vmatprep.mubr.bf16.mxu0 0
      %593 = vmatmul.mubr.bf16.gmra.mrb[0].mxu0 %v496
      %v594 = vpop.f32.mrb[0].mxu0
      %v595 = vadd.f32 0.0, %v594
      %v596 = vpop.f32.mrb[0].mxu0
      %v597 = vpop.f32.mrb[0].mxu0
      %v598 = vadd.f32 0.0, %v597
      %v599 = vpop.f32.mrb[0].mxu0
      %600 = vmatprep.mubr.bf16.mxu0 0
      %601 = vmatmul.mubr.bf16.gmra.mrb[0].mxu0 %v497
      %v602 = vpop.f32.mrb[0].mxu0
      %v603 = vadd.f32 0.0, %v602
      %v604 = vpop.f32.mrb[0].mxu0
      %v605 = vpop.f32.mrb[0].mxu0
      %v606 = vadd.f32 0.0, %v605
      %v607 = vpop.f32.mrb[0].mxu0
      %608 = vmatprep.mubr.bf16.mxu0 0
      %609 = vmatmul.mubr.bf16.gmra.mrb[0].mxu0 %v498
      %v610 = vpop.f32.mrb[0].mxu0
      %v611 = vadd.f32 0.0, %v610
      %v612 = vpop.f32.mrb[0].mxu0
      %v613 = vpop.f32.mrb[0].mxu0
      %v614 = vadd.f32 0.0, %v613
      %v615 = vpop.f32.mrb[0].mxu0
      %616 = vmatprep.mubr.bf16.mxu0 0
      %617 = vmatmul.mubr.bf16.gmra.mrb[0].mxu0 %v499
      %v618 = vpop.f32.mrb[0].mxu0
      %v619 = vadd.f32 0.0, %v618
      %v620 = vpop.f32.mrb[0].mxu0
      %v621 = vpop.f32.mrb[0].mxu0
      %v622 = vadd.f32 0.0, %v621
      %v623 = vpop.f32.mrb[0].mxu0
      %624 = vmatprep.mubr.bf16.mxu0 0
      %625 = vmatmul.mubr.bf16.gmra.mrb[0].mxu0 %v500
      %v626 = vpop.f32.mrb[0].mxu0
      %v627 = vadd.f32 0.0, %v626
      %v628 = vpop.f32.mrb[0].mxu0
      %v629 = vpop.f32.mrb[0].mxu0
      %v630 = vadd.f32 0.0, %v629
      %v631 = vpop.f32.mrb[0].mxu0
      %632 = vmatprep.mubr.bf16.mxu0 0
      %633 = vmatmul.mubr.bf16.gmra.mrb[0].mxu0 %v501
      %v634 = vpop.f32.mrb[0].mxu0
      %v635 = vadd.f32 0.0, %v634
      %v636 = vpop.f32.mrb[0].mxu0
      %v637 = vpop.f32.mrb[0].mxu0
      %v638 = vadd.f32 0.0, %v637
      %v639 = vpop.f32.mrb[0].mxu0
      %640 = vmatprep.mubr.bf16.mxu0 0
      %641 = vmatmul.mubr.bf16.gmra.mrb[0].mxu0 %v502
      %v642 = vpop.f32.mrb[0].mxu0
      %v643 = vadd.f32 0.0, %v642
      %v644 = vpop.f32.mrb[0].mxu0
      %v645 = vpop.f32.mrb[0].mxu0
      %v646 = vadd.f32 0.0, %v645
      %v647 = vpop.f32.mrb[0].mxu0
      %648 = vmatprep.mubr.bf16.mxu0 0
      %649 = vmatmul.mubr.bf16.gmra.mrb[0].mxu0 %v503
      %v650 = vpop.f32.mrb[0].mxu0
      %v651 = vadd.f32 0.0, %v650
      %v652 = vpop.f32.mrb[0].mxu0
      %v653 = vpop.f32.mrb[0].mxu0
      %v654 = vadd.f32 0.0, %v653
      %v655 = vpop.f32.mrb[0].mxu0
      %656 = vdwg.mxu0
      %v673 = vunpack.c.l.b16 %v416
      %v674 = vunpack.c.l.b16 %v417
      %v675 = vunpack.c.l.b16 %v418
      %v676 = vunpack.c.l.b16 %v419
      %v677 = vunpack.c.l.b16 %v420
      %v678 = vunpack.c.l.b16 %v421
      %v679 = vunpack.c.l.b16 %v422
      %v680 = vunpack.c.l.b16 %v423
      %v681 = vunpack.c.l.b16 %v424
      %v682 = vunpack.c.l.b16 %v425
      %v683 = vunpack.c.l.b16 %v426
      %v684 = vunpack.c.l.b16 %v427
      %v685 = vunpack.c.l.b16 %v428
      %v686 = vunpack.c.l.b16 %v429
      %v687 = vunpack.c.l.b16 %v430
      %v688 = vunpack.c.l.b16 %v431
      %v689 = vpack.c.b16 %v674, %v673
      %v690 = vpack.c.b16 %v676, %v675
      %v691 = vpack.c.b16 %v678, %v677
      %v692 = vpack.c.b16 %v680, %v679
      %v693 = vpack.c.b16 %v682, %v681
      %v694 = vpack.c.b16 %v684, %v683
      %v695 = vpack.c.b16 %v686, %v685
      %v696 = vpack.c.b16 %v688, %v687
      %705 = vmatprep.subr.bf16.mxu0 0
      %706 = vmatpush1.bf16.msra.mxu0 %v689
      %707 = vmatprep.subr.bf16.mxu0 0
      %708 = vmatpush1.bf16.msra.mxu0 %v690
      %709 = vmatprep.subr.bf16.mxu0 0
      %710 = vmatpush1.bf16.msra.mxu0 %v691
      %711 = vmatprep.subr.bf16.mxu0 0
      %712 = vmatpush1.bf16.msra.mxu0 %v692
      %713 = vmatprep.subr.bf16.mxu0 0
      %714 = vmatpush1.bf16.msra.mxu0 %v693
      %715 = vmatprep.subr.bf16.mxu0 0
      %716 = vmatpush1.bf16.msra.mxu0 %v694
      %717 = vmatprep.subr.bf16.mxu0 0
      %718 = vmatpush1.bf16.msra.mxu0 %v695
      %719 = vmatprep.subr.bf16.mxu0 0
      %720 = vmatpush1.bf16.msra.mxu0 %v696
      %721 = vmatprep.subr.bf16.mxu0 0
      %722 = vmatpush1.bf16.msra.mxu0 0
      %723 = vmatprep.subr.bf16.mxu0 0
      %724 = vmatpush1.bf16.msra.mxu0 0
      %725 = vmatprep.subr.bf16.mxu0 0
      %726 = vmatpush1.bf16.msra.mxu0 0
      %727 = vmatprep.subr.bf16.mxu0 0
      %728 = vmatpush1.bf16.msra.mxu0 0
      %729 = vmatprep.subr.bf16.mxu0 0
      %730 = vmatpush1.bf16.msra.mxu0 0
      %731 = vmatprep.subr.bf16.mxu0 0
      %732 = vmatpush1.bf16.msra.mxu0 0
      %733 = vmatprep.subr.bf16.mxu0 0
      %734 = vmatpush1.bf16.msra.mxu0 0
      %735 = vmatprep.subr.bf16.mxu0 0
      %736 = vmatpush1.bf16.msra.mxu0 0
      %737 = vmatprep.mubr.bf16.mxu0 0
      %738 = vmatmul.mubr.bf16.gmra.mrb[0].mxu0 %v408
      %v739 = vpop.f32.mrb[0].mxu0
      %v740 = vadd.f32 %v595, %v739
      %v741 = vpop.f32.mrb[0].mxu0
      %v742 = vpop.f32.mrb[0].mxu0
      %v743 = vadd.f32 %v598, %v742
      %v744 = vpop.f32.mrb[0].mxu0
      %745 = vmatprep.mubr.bf16.mxu0 0
      %746 = vmatmul.mubr.bf16.gmra.mrb[0].mxu0 %v409
      %v747 = vpop.f32.mrb[0].mxu0
      %v748 = vadd.f32 %v603, %v747
      %v749 = vpop.f32.mrb[0].mxu0
      %v750 = vpop.f32.mrb[0].mxu0
      %v751 = vadd.f32 %v606, %v750
      %v752 = vpop.f32.mrb[0].mxu0
      %753 = vmatprep.mubr.bf16.mxu0 0
      %754 = vmatmul.mubr.bf16.gmra.mrb[0].mxu0 %v410
      %v755 = vpop.f32.mrb[0].mxu0
      %v756 = vadd.f32 %v611, %v755
      %v757 = vpop.f32.mrb[0].mxu0
      %v758 = vpop.f32.mrb[0].mxu0
      %v759 = vadd.f32 %v614, %v758
      %v760 = vpop.f32.mrb[0].mxu0
      %761 = vmatprep.mubr.bf16.mxu0 0
      %762 = vmatmul.mubr.bf16.gmra.mrb[0].mxu0 %v411
      %v763 = vpop.f32.mrb[0].mxu0
      %v764 = vadd.f32 %v619, %v763
      %v765 = vpop.f32.mrb[0].mxu0
      %v766 = vpop.f32.mrb[0].mxu0
      %v767 = vadd.f32 %v622, %v766
      %v768 = vpop.f32.mrb[0].mxu0
      %769 = vmatprep.mubr.bf16.mxu0 0
      %770 = vmatmul.mubr.bf16.gmra.mrb[0].mxu0 %v412
      %v771 = vpop.f32.mrb[0].mxu0
      %v772 = vadd.f32 %v627, %v771
      %v773 = vpop.f32.mrb[0].mxu0
      %v774 = vpop.f32.mrb[0].mxu0
      %v775 = vadd.f32 %v630, %v774
      %v776 = vpop.f32.mrb[0].mxu0
      %777 = vmatprep.mubr.bf16.mxu0 0
      %778 = vmatmul.mubr.bf16.gmra.mrb[0].mxu0 %v413
      %v779 = vpop.f32.mrb[0].mxu0
      %v780 = vadd.f32 %v635, %v779
      %v781 = vpop.f32.mrb[0].mxu0
      %v782 = vpop.f32.mrb[0].mxu0
      %v783 = vadd.f32 %v638, %v782
      %v784 = vpop.f32.mrb[0].mxu0
      %785 = vmatprep.mubr.bf16.mxu0 0
      %786 = vmatmul.mubr.bf16.gmra.mrb[0].mxu0 %v414
      %v787 = vpop.f32.mrb[0].mxu0
      %v788 = vadd.f32 %v643, %v787
      %v789 = vpop.f32.mrb[0].mxu0
      %v790 = vpop.f32.mrb[0].mxu0
      %v791 = vadd.f32 %v646, %v790
      %v792 = vpop.f32.mrb[0].mxu0
      %793 = vmatprep.mubr.bf16.mxu0 0
      %794 = vmatmul.mubr.bf16.gmra.mrb[0].mxu0 %v415
      %v795 = vpop.f32.mrb[0].mxu0
      %v796 = vadd.f32 %v651, %v795
      %v797 = vpop.f32.mrb[0].mxu0
      %v798 = vpop.f32.mrb[0].mxu0
      %v799 = vadd.f32 %v654, %v798
      %v800 = vpop.f32.mrb[0].mxu0
      %801 = vdwg.mxu0
      %v802 = vld [vmem:[%s5] sm:$0x1]
      %v804 = vlaneseq
      %v805 = vshrl.u32 %v804, 7
      %v806 = vsub.s32 0, %v805
      %v807 = vrot.slane %v802, %v806
      %v809 = vmul.f32 %v740, %v807
      %v810 = vmul.f32 %v743, %v807
      %v811 = vmul.f32 %v748, %v807
      %v812 = vmul.f32 %v751, %v807
      %v813 = vmul.f32 %v756, %v807
      %v814 = vmul.f32 %v759, %v807
      %v815 = vmul.f32 %v764, %v807
      %v816 = vmul.f32 %v767, %v807
      %v817 = vmul.f32 %v772, %v807
      %v818 = vmul.f32 %v775, %v807
      %v819 = vmul.f32 %v780, %v807
      %v820 = vmul.f32 %v783, %v807
      %v821 = vmul.f32 %v788, %v807
      %v822 = vmul.f32 %v791, %v807
      %v823 = vmul.f32 %v796, %v807
      %v824 = vmul.f32 %v799, %v807
      %v825 = vld [vmem:[%s6] sm:$0x1]
      %v827 = vlaneseq
      %v828 = vshrl.u32 %v827, 7
      %v829 = vsub.s32 0, %v828
      %v830 = vrot.slane %v825, %v829
      %v832 = vadd.f32 %v809, %v830
      %v833 = vadd.f32 %v810, %v830
      %v834 = vadd.f32 %v811, %v830
      %v835 = vadd.f32 %v812, %v830
      %v836 = vadd.f32 %v813, %v830
      %v837 = vadd.f32 %v814, %v830
      %v838 = vadd.f32 %v815, %v830
      %v839 = vadd.f32 %v816, %v830
      %v840 = vadd.f32 %v817, %v830
      %v841 = vadd.f32 %v818, %v830
      %v842 = vadd.f32 %v819, %v830
      %v843 = vadd.f32 %v820, %v830
      %v844 = vadd.f32 %v821, %v830
      %v845 = vadd.f32 %v822, %v830
      %v846 = vadd.f32 %v823, %v830
      %v847 = vadd.f32 %v824, %v830
      %v848 = vmax.f32 %v832, 0.0
      %v849 = vmax.f32 %v833, 0.0
      %v850 = vmax.f32 %v834, 0.0
      %v851 = vmax.f32 %v835, 0.0
      %v852 = vmax.f32 %v836, 0.0
      %v853 = vmax.f32 %v837, 0.0
      %v854 = vmax.f32 %v838, 0.0
      %v855 = vmax.f32 %v839, 0.0
      %v856 = vmax.f32 %v840, 0.0
      %v857 = vmax.f32 %v841, 0.0
      %v858 = vmax.f32 %v842, 0.0
      %v859 = vmax.f32 %v843, 0.0
      %v860 = vmax.f32 %v844, 0.0
      %v861 = vmax.f32 %v845, 0.0
      %v862 = vmax.f32 %v846, 0.0
      %v863 = vmax.f32 %v847, 0.0
      %v864 = vpack.c.bf16 %v849, %v848
      %v865 = vpack.c.bf16 %v851, %v850
      %v866 = vpack.c.bf16 %v853, %v852
      %v867 = vpack.c.bf16 %v855, %v854
      %v868 = vpack.c.bf16 %v857, %v856
      %v869 = vpack.c.bf16 %v859, %v858
      %v870 = vpack.c.bf16 %v861, %v860
      %v871 = vpack.c.bf16 %v863, %v862
      %v880 = vunpack.c.l.b16 %v864
      %v881 = vunpack.c.h.b16 %v864
      %v882 = vunpack.c.l.b16 %v865
      %v883 = vunpack.c.h.b16 %v865
      %v884 = vunpack.c.l.b16 %v866
      %v885 = vunpack.c.h.b16 %v866
      %v886 = vunpack.c.l.b16 %v867
      %v887 = vunpack.c.h.b16 %v867
      %v888 = vunpack.c.l.b16 %v868
      %v889 = vunpack.c.h.b16 %v868
      %v890 = vunpack.c.l.b16 %v869
      %v891 = vunpack.c.h.b16 %v869
      %v892 = vunpack.c.l.b16 %v870
      %v893 = vunpack.c.h.b16 %v870
      %v894 = vunpack.c.l.b16 %v871
      %v895 = vunpack.c.h.b16 %v871
      %v896 = vpack.c.b16 %v880, %v880
      %v897 = vpack.c.b16 %v881, %v881
      %v898 = vpack.c.b16 %v882, %v882
      %v899 = vpack.c.b16 %v883, %v883
      %v900 = vpack.c.b16 %v884, %v884
      %v901 = vpack.c.b16 %v885, %v885
      %v902 = vpack.c.b16 %v886, %v886
      %v903 = vpack.c.b16 %v887, %v887
      %v904 = vpack.c.b16 %v888, %v888
      %v905 = vpack.c.b16 %v889, %v889
      %v906 = vpack.c.b16 %v890, %v890
      %v907 = vpack.c.b16 %v891, %v891
      %v908 = vpack.c.b16 %v892, %v892
      %v909 = vpack.c.b16 %v893, %v893
      %v910 = vpack.c.b16 %v894, %v894
      %v911 = vpack.c.b16 %v895, %v895
      %928 = vst [vmem:[#allocation12] sm:$0xf] %v896
      %929 = vst [vmem:[#allocation12 + $0x4] sm:$0xf] %v897
      %930 = vst [vmem:[#allocation12 + $0x8] sm:$0xf] %v898
      %931 = vst [vmem:[#allocation12 + $0xc] sm:$0xf] %v899
      %932 = vst [vmem:[#allocation12 + $0x10] sm:$0xf] %v900
      %933 = vst [vmem:[#allocation12 + $0x14] sm:$0xf] %v901
      %934 = vst [vmem:[#allocation12 + $0x18] sm:$0xf] %v902
      %935 = vst [vmem:[#allocation12 + $0x1c] sm:$0xf] %v903
      %936 = vst [vmem:[#allocation12 + $0x20] sm:$0xf] %v904
      %937 = vst [vmem:[#allocation12 + $0x24] sm:$0xf] %v905
      %938 = vst [vmem:[#allocation12 + $0x28] sm:$0xf] %v906
      %939 = vst [vmem:[#allocation12 + $0x2c] sm:$0xf] %v907
      %940 = vst [vmem:[#allocation12 + $0x30] sm:$0xf] %v908
      %941 = vst [vmem:[#allocation12 + $0x34] sm:$0xf] %v909
      %942 = vst [vmem:[#allocation12 + $0x38] sm:$0xf] %v910
      %943 = vst [vmem:[#allocation12 + $0x3c] sm:$0xf] %v911
    $region57: #{tpu_custom_call.1} parent=1 // pred_fallthru
      _
    // Predicated region
    $region58: #{tpu_custom_call.1} parent=1 // pred_check
      _
    $region59: #{tpu_custom_call.1} parent=1 // pred_check_branch
      %945 = sbr.rel (0) target = $region61
    $region60: #{tpu_custom_call.1} parent=1 // pred_region
      %s947 = ssub.s32 1024, 1024
      %948 = vsyncadd [#allocation5], %s947
      %s949 = sshll.u32 [#allocation12], 4
      %s950 = int_to_ptr.vmem [resolvable:$true] %s949
      %955 = dma.vmem_to_hbm [thread:$0]  %s950, 1024, %s7, [#allocation5], 64, 64, 4
    $region61: #{tpu_custom_call.1} parent=1 // pred_fallthru
      _
    // Predicated region
    $region62: #{tpu_custom_call.1} parent=1 // pred_check
      _
    $region63: #{tpu_custom_call.1} parent=1 // pred_check_branch
      %957 = sbr.rel (0) target = $region65
    $region64: #{tpu_custom_call.1} parent=1 // pred_region
      %958 = dma.done [#allocation5], 1024
    $region65: #{tpu_custom_call.1} parent=1 // pred_fallthru
      _
    %959 = vsyncpa [#allocation4], 1
    %960 = vsyncpa [#allocation7], 1
    %961 = vsyncpa [#allocation10], 1
    %962 = vsyncpa [#allocation5], 1

</llo_original>
